<compile_context>
chip_gen: v5e
topology: v5e:2x2
jax: 0.10.0
libtpu: 0.0.40
codegen_flags: <defaults>
</compile_context>

<pallas_src>
import jax
import jax.numpy as jnp
from jax.experimental import pallas as pl
from jax.experimental.pallas import tpu as pltpu


def _round_up(x, m):
    return ((x + m - 1) // m) * m


def _round_down(x, m):
    return (x // m) * m


def _vmem_capacity_bytes():
    """Best-effort VMEM capacity query with a conservative fallback."""
    try:
        info = pltpu.get_tpu_info()
        cap = getattr(info, "vmem_capacity_bytes", None)
        if cap:
            return int(cap)
    except Exception:
        pass
    return 64 * 1024 * 1024  # conservative: v7x per-TensorCore VMEM


def rgcn_kernel(adj_ref, x_ref, w_ref, b_ref, o_ref):
    """One (node-tile i, relation r) grid step.

    adj_ref : [1, tn, N]  bf16 adjacency row tile for relation r
    x_ref   : [N, I]      f32 node features (VMEM-resident across the grid)
    w_ref   : [R, I, O]   f32 per-relation weights (resident; indexed by r)
    b_ref   : [1, O]      f32 bias (resident)
    o_ref   : [tn, O]     f32 output tile; block index constant over r, so it
                          doubles as the relation accumulator.
    """
    r = pl.program_id(1)

    # bf16 is exact for 0/1 adjacency entries; upcast in VMEM so the matmul
    # numerics match the float32 reference.
    a = adj_ref[0].astype(jnp.float32)
    support = jnp.dot(a, x_ref[...], preferred_element_type=jnp.float32)
    contrib = jnp.dot(support, w_ref[r], preferred_element_type=jnp.float32)

    @pl.when(r == 0)
    def _init():
        o_ref[...] = b_ref[...] + contrib      # bias broadcasts over rows

    @pl.when(r > 0)
    def _accum():
        o_ref[...] += contrib


def rgcn_forward(x, adj, params, *, max_tile_nodes=2048):
    """RGCN layer forward.

    x:      [N, input_dim]  node features
    adj:    [num_rel, N, N] dense 0/1 adjacency (ideally already bf16)
    params: {'w_rel': [R, B], 'w_bases': [B, I, O]} or {'weight': [R, I, O]};
            optional 'bias': [O] (else None).
    """
    # Basis decomposition (mirrors torch.einsum('rb,bio->rio')) done once in
    # the wrapper, not per grid step.
    if params.get("w_bases") is not None:
        weight = jnp.einsum("rb,bio->rio", params["w_rel"], params["w_bases"])
    else:
        weight = params["weight"]
    weight = weight.astype(jnp.float32)

    R, N, _ = adj.shape
    I = x.shape[1]
    O = weight.shape[2]

    bias = params.get("bias")
    if bias is None:
        bias = jnp.zeros((O,), jnp.float32)
    bias2d = bias.reshape(1, O).astype(jnp.float32)

    # Adjacency streamed as bf16 (exact for 0/1 edge weights); a no-op when
    # the caller already stores the adjacency in bf16 (recommended).
    adj = adj.astype(jnp.bfloat16)
    x = x.astype(jnp.float32)

    # ---- VMEM-budget-driven node-tile size --------------------------------
    lane = lambda d: max(_round_up(d, 128), 128)   # lane (last-dim) padding
    sub = lambda d: max(_round_up(d, 8), 8)        # sublane padding

    vmem_cap = _vmem_capacity_bytes()
    vmem_limit = int(vmem_cap * 0.9)

    # Resident (constant-index) buffers, with default double-buffering and
    # lane/sublane padding accounted for.
    x_bytes = 2 * sub(N) * lane(I) * 4
    w_bytes = 2 * R * sub(I) * lane(O) * 4
    b_bytes = 2 * 8 * lane(O) * 4

    budget = int(vmem_limit * 0.85) - (x_bytes + w_bytes + b_bytes)
    # Per output row: double-buffered bf16 A row (full-N columns) + f32 out.
    per_row = 2 * lane(N) * 2 + 2 * lane(O) * 4
    tn = budget // per_row if budget > 0 else 0
    tn = max(16, _round_down(tn, 16))              # 16-aligned for bf16 packing
    tn = min(tn, _round_up(max_tile_nodes, 16))
    # TODO(synk): for graphs so large that even tn=16 plus the resident X
    # exceed VMEM, add a third (contraction) grid axis and drop the resident X.

    if tn >= N:
        if N > 1024:
            # Keep >= 2 node tiles so the "parallel" axis can be split across
            # TensorCores (v7x dual-TC / megacore).
            tn = _round_up((N + 1) // 2, 16)
        else:
            tn = N  # full-dim block: exact, satisfies the full-dim exception

    grid = (pl.cdiv(N, tn), R)

    out = pl.pallas_call(
        rgcn_kernel,
        out_shape=jax.ShapeDtypeStruct((N, O), jnp.float32),
        grid_spec=pltpu.PrefetchScalarGridSpec(
            num_scalar_prefetch=0,
            grid=grid,
            in_specs=[
                # A_r row tile: new block every (i, r) -> auto double-buffered
                # DMA.  Last dim is the full N (no padded copy of adj is ever
                # materialized); the last row tile may be partial — its extra
                # rows only produce output rows >= N, which Pallas masks.
                pl.BlockSpec((1, tn, N), lambda i, r: (r, i, 0)),
                # X: resident in VMEM across the whole grid.
                pl.BlockSpec((N, I), lambda i, r: (0, 0)),
                # All relation weights resident; kernel indexes w_ref[r].
                pl.BlockSpec((R, I, O), lambda i, r: (0, 0, 0)),
                # bias: resident.
                pl.BlockSpec((1, O), lambda i, r: (0, 0)),
            ],
            out_specs=pl.BlockSpec((tn, O), lambda i, r: (i, 0)),
        ),
        compiler_params=pltpu.CompilerParams(
            dimension_semantics=("parallel", "arbitrary"),
            vmem_limit_bytes=vmem_limit,
        ),
    )(adj, x, weight, bias2d)

    return out


def rgcn_ref(x, adj, params):
    """Pure-JAX reference mirroring the PyTorch forward exactly."""
    if params.get("w_bases") is not None:
        weight = jnp.einsum("rb,bio->rio", params["w_rel"], params["w_bases"])
    else:
        weight = params["weight"]
    R, I, O = weight.shape
    weights2d = weight.reshape(R * I, O)
    supports = [adj[r] @ x for r in range(R)]
    tmp = jnp.concatenate(supports, axis=1)
    out = tmp @ weights2d
    if params.get("bias") is not None:
        out = out + params["bias"][None, :]
    return out


def init_params(key, input_dim, output_dim, num_rel, num_bases, bias=False):
    """Xavier-uniform-style init mimicking RGCN.reset_parameters()."""
    keys = jax.random.split(key, 2)

    def xavier(k, shape, fan_in, fan_out):
        bound = (6.0 / (fan_in + fan_out)) ** 0.5
        return jax.random.uniform(k, shape, jnp.float32, -bound, bound)

    params = {}
    if num_bases > 0:
        params["w_bases"] = xavier(keys[0], (num_bases, input_dim, output_dim),
                                   input_dim, output_dim)
        params["w_rel"] = xavier(keys[1], (num_rel, num_bases), num_bases, num_rel)
        params["weight"] = None
    else:
        params["weight"] = xavier(keys[0], (num_rel, input_dim, output_dim),
                                  input_dim, output_dim)
        params["w_bases"] = None
        params["w_rel"] = None
    params["bias"] = jnp.zeros((output_dim,), jnp.float32) if bias else None
    return params


if __name__ == "__main__":
    key = jax.random.PRNGKey(0)
    k_x, k_a, k_p1, k_p2 = jax.random.split(key, 4)

    num_rel = 3
    num_bases = 2
    input_dim = 16
    output_dim = 32
    num_nodes = 20  # deliberately not a multiple of 8: exercises partial tiles

    x = jax.random.normal(k_x, (num_nodes, input_dim), jnp.float32)
    # Dense 0/1 adjacency per relation, stored directly in bf16 (exact for 0/1;
    # stand-in for torch.sparse adjacency).
    adj = jax.random.bernoulli(
        k_a, 0.3, (num_rel, num_nodes, num_nodes)).astype(jnp.bfloat16)
    adj_f32 = adj.astype(jnp.float32)  # for the pure-JAX reference

    # Case 1: basis decomposition (num_bases > 0), no bias (module default).
    p1 = init_params(k_p1, input_dim, output_dim, num_rel, num_bases, bias=False)
    out1 = jax.block_until_ready(rgcn_forward(x, adj, p1))
    ref1 = rgcn_ref(x, adj_f32, p1)
    assert out1.shape == (num_nodes, output_dim)
    assert jnp.allclose(out1, ref1, atol=1e-3, rtol=1e-3), \
        float(jnp.max(jnp.abs(out1 - ref1)))

    # Case 2: direct per-relation weights (num_bases == 0), with bias.
    p2 = init_params(k_p2, input_dim, output_dim, num_rel, 0, bias=True)
    out2 = jax.block_until_ready(rgcn_forward(x, adj, p2))
    ref2 = rgcn_ref(x, adj_f32, p2)
    assert jnp.allclose(out2, ref2, atol=1e-3, rtol=1e-3), \
        float(jnp.max(jnp.abs(out2 - ref2)))

    print("KERNEL_OK")
</pallas_src>

<mosaic_0001>
module attributes {stable_mosaic.version = 11 : i64} {
  func.func @rgcn_kernel(%arg0: i32, %arg1: i32, %arg2: memref<1x20x20xbf16, #tpu.memory_space<vmem>>, %arg3: memref<20x16xf32, #tpu.memory_space<vmem>>, %arg4: memref<3x16x32xf32, #tpu.memory_space<vmem>>, %arg5: memref<1x32xf32, #tpu.memory_space<vmem>>, %arg6: memref<20x32xf32, #tpu.memory_space<vmem>>) attributes {dimension_semantics = [#tpu.dimension_semantics<parallel>, #tpu.dimension_semantics<arbitrary>], iteration_bounds = array<i64: 1, 3>, scalar_prefetch = 0 : i64, scratch_operands = 0 : i64, tpu.core_type = #tpu.core_type<tc>, window_params = [{transform_indices = @transform_0, window_bounds = array<i64: 1, 20, 20>}, {pipeline_mode = #tpu.pipeline_mode<synchronous>, transform_indices = @transform_1, window_bounds = array<i64: 20, 16>}, {pipeline_mode = #tpu.pipeline_mode<synchronous>, transform_indices = @transform_2, window_bounds = array<i64: 3, 16, 32>}, {pipeline_mode = #tpu.pipeline_mode<synchronous>, transform_indices = @transform_3, window_bounds = array<i64: 1, 32>}, {transform_indices = @transform_4, window_bounds = array<i64: 20, 32>}]} {
    %c0 = arith.constant 0 : index
    %c0_0 = arith.constant 0 : index
    %c0_1 = arith.constant 0 : index
    %0 = vector.load %arg2[%c0, %c0_0, %c0_1] : memref<1x20x20xbf16, #tpu.memory_space<vmem>>, vector<1x20x20xbf16>
    %1 = vector.shape_cast %0 : vector<1x20x20xbf16> to vector<20x20xbf16>
    %2 = arith.extf %1 : vector<20x20xbf16> to vector<20x20xf32>
    %c0_2 = arith.constant 0 : index
    %c0_3 = arith.constant 0 : index
    %3 = vector.load %arg3[%c0_2, %c0_3] : memref<20x16xf32, #tpu.memory_space<vmem>>, vector<20x16xf32>
    %cst = arith.constant dense<0.000000e+00> : vector<20x16xf32>
    %4 = tpu.matmul %2, %3, %cst {dimension_numbers = #tpu.dot_dimension_numbers<[1], [0], [0], [1], [0, 0, 1, 1], [], []>} : vector<20x20xf32>, vector<20x16xf32>, vector<20x16xf32> -> vector<20x16xf32>
    %5 = arith.index_cast %arg1 : i32 to index
    %c0_4 = arith.constant 0 : index
    %c0_5 = arith.constant 0 : index
    %6 = vector.load %arg4[%5, %c0_4, %c0_5] : memref<3x16x32xf32, #tpu.memory_space<vmem>>, vector<1x16x32xf32>
    %7 = vector.shape_cast %6 : vector<1x16x32xf32> to vector<16x32xf32>
    %cst_6 = arith.constant dense<0.000000e+00> : vector<20x32xf32>
    %8 = tpu.matmul %4, %7, %cst_6 {dimension_numbers = #tpu.dot_dimension_numbers<[1], [0], [0], [1], [0, 0, 1, 1], [], []>} : vector<20x16xf32>, vector<16x32xf32>, vector<20x32xf32> -> vector<20x32xf32>
    %c0_i32 = arith.constant 0 : i32
    %9 = arith.cmpi eq, %arg1, %c0_i32 : i32
    %10 = arith.extui %9 : i1 to i32
    %c0_i32_7 = arith.constant 0 : i32
    %11 = arith.cmpi ne, %10, %c0_i32_7 : i32
    scf.if %11 {
      %c0_10 = arith.constant 0 : index
      %c0_11 = arith.constant 0 : index
      %15 = vector.load %arg5[%c0_10, %c0_11] : memref<1x32xf32, #tpu.memory_space<vmem>>, vector<1x32xf32>
      %16 = vector.broadcast %15 : vector<1x32xf32> to vector<20x32xf32>
      %17 = arith.addf %16, %8 : vector<20x32xf32>
      %c0_12 = arith.constant 0 : index
      %c0_13 = arith.constant 0 : index
      %18 = vector.load %arg6[%c0_12, %c0_13] : memref<20x32xf32, #tpu.memory_space<vmem>>, vector<20x32xf32>
      tpu.vector_store %arg6[%c0_12, %c0_13], %17 {strides = array<i32>} : memref<20x32xf32, #tpu.memory_space<vmem>>, vector<20x32xf32>,
    } else {
    }
    %c0_i32_8 = arith.constant 0 : i32
    %12 = arith.cmpi sgt, %arg1, %c0_i32_8 : i32
    %13 = arith.extui %12 : i1 to i32
    %c0_i32_9 = arith.constant 0 : i32
    %14 = arith.cmpi ne, %13, %c0_i32_9 : i32
    scf.if %14 {
      %c0_10 = arith.constant 0 : index
      %c0_11 = arith.constant 0 : index
      %15 = vector.load %arg6[%c0_10, %c0_11] : memref<20x32xf32, #tpu.memory_space<vmem>>, vector<20x32xf32>
      %16 = arith.addf %15, %8 : vector<20x32xf32>
      %c0_12 = arith.constant 0 : index
      %c0_13 = arith.constant 0 : index
      %17 = vector.load %arg6[%c0_12, %c0_13] : memref<20x32xf32, #tpu.memory_space<vmem>>, vector<20x32xf32>
      tpu.vector_store %arg6[%c0_12, %c0_13], %16 {strides = array<i32>} : memref<20x32xf32, #tpu.memory_space<vmem>>, vector<20x32xf32>,
    } else {
    }
    return
  }
  func.func @transform_0(%arg0: i32, %arg1: i32) -> (i32, i32, i32) {
    %c0_i32 = arith.constant 0 : i32
    %c0_i32_0 = arith.constant 0 : i32
    return %arg1, %arg0, %c0_i32 : i32, i32, i32
  }
  func.func @transform_1(%arg0: i32, %arg1: i32) -> (i32, i32) {
    %c0_i32 = arith.constant 0 : i32
    %c0_i32_0 = arith.constant 0 : i32
    %c0_i32_1 = arith.constant 0 : i32
    return %c0_i32, %c0_i32_0 : i32, i32
  }
  func.func @transform_2(%arg0: i32, %arg1: i32) -> (i32, i32, i32) {
    %c0_i32 = arith.constant 0 : i32
    %c0_i32_0 = arith.constant 0 : i32
    %c0_i32_1 = arith.constant 0 : i32
    %c0_i32_2 = arith.constant 0 : i32
    return %c0_i32, %c0_i32_0, %c0_i32_1 : i32, i32, i32
  }
  func.func @transform_3(%arg0: i32, %arg1: i32) -> (i32, i32) {
    %c0_i32 = arith.constant 0 : i32
    %c0_i32_0 = arith.constant 0 : i32
    %c0_i32_1 = arith.constant 0 : i32
    return %c0_i32, %c0_i32_0 : i32, i32
  }
  func.func @transform_4(%arg0: i32, %arg1: i32) -> (i32, i32) {
    %c0_i32 = arith.constant 0 : i32
    %c0_i32_0 = arith.constant 0 : i32
    return %arg0, %c0_i32 : i32, i32
  }
}

</mosaic_0001>

<llo_original>
// kernel: tpu_custom_call.1
$region0: #{tpu_custom_call.1}
  #allocation0 [shape = 'u32[]', space=smem, size = 0x4, offset = 0x4, fixed_abs, tag = 'smem constant byte address 0x4 - core index']
  #allocation1 [shape = 'u32[72,128]{1,0:T(1,128)}', space=vmem, size = 0x9000, scoped, tag = 'internal scratch']
  %s0 = inlined_call_operand.vmem [shape: bf16[3,20,20], index: 0, kind: input, shape index: {}]
  %s1 = inlined_call_operand.vmem [shape: f32[20,16], index: 1, kind: input, shape index: {}]
  %s2 = inlined_call_operand.hbm [shape: f32[3,16,32], index: 2, kind: input, shape index: {}]
  %s3 = inlined_call_operand.vmem [shape: f32[1,32], index: 3, kind: input, shape index: {}]
  %s4 = inlined_call_operand.hbm [shape: f32[20,32], index: 4, kind: output, shape index: {}]
  %s5 = sld [smem:[#allocation0]]
  $region61: #{tpu_custom_call.1} parent=0
    _
  %s7 = ssub.s32 1, %s5
  %s8 = scalar_select 0, %s7, %s5
  $region1: #{tpu_custom_call.1} parent=0
    #allocation2 [shape = 'u8[24576]{0}', space=vmem, size = 0x6000, scoped, tag = 'input window, operand 2, single buffered']
    #allocation3 [shape = 's32[2]{0}', space=sflag, size = 0x8, scoped, tag = 'scoped memory for tpu_custom_call.1']
    #allocation4 [shape = 's32[2]{0}', space=sflag, size = 0x8, scoped, tag = 'scoped memory for tpu_custom_call.1']
    #allocation5 [shape = 'u8[12288]{0}', space=vmem, size = 0x3000, scoped, tag = 'output window, operand 0, single buffered']
    %9 = vsyncpa [#allocation3], 0
    %10 = vsyncpa [#allocation4], 0
    loop: start=0, step=1, limit=5
    $region2: #{tpu_custom_call.1} parent=1 // loop_pre_header
      _
    $region3: #{tpu_custom_call.1} parent=1 // loop_header
      %s12 = sphi 0, %s16
      %p13 = scmp.ge.s32.totalorder %s12, 5
      %s19 = sphi 0, %s31
      %s20 = sphi 0, %s27
      %s21 = sphi 0, %s19
      %s22 = sphi 0, %s20
      %s23 = sphi 0, %s21
      %s24 = sphi 0, %s22
      %s36 = sphi 0, %s38
      %s39 = sphi 0, %s36
      %s40 = sphi 0, %s39
      %s56 = sphi 0, %s40
      %s60 = sphi 0, %s60
      %s62 = sphi 0, %s60
      %s63 = sphi 0, %s62
      %s77 = sphi 0, %s63
      %s81 = sphi 0, %s81
      %s83 = sphi 0, %s81
      %s84 = sphi 0, %s83
      %s98 = sphi 0, %s84
      %s102 = sphi 0, %s102
      %s104 = sphi 0, %s102
      %s105 = sphi 0, %s104
      %s119 = sphi 0, %s105
      %s125 = sphi 0, %s127
      %s128 = sphi 0, %s125
      %s129 = sphi 0, %s128
      %s145 = sphi 0, %s129
    $region4: #{tpu_custom_call.1} parent=1 // loop_header_branch
      %15 = sbr.rel (%p13) target = $region8
    $region5: #{tpu_custom_call.1} parent=1 // loop_body
      %s17 = ssub.s32 %s12, 1
      %s18 = ssub.s32 %s12, 2
      %s25 = sadd.s32 1, %s20
      %p26 = scmp.ge.s32.totalorder %s25, 3
      %s27 = scalar_select %p26, 0, %s25
      %s28 = sadd.s32 1, %s19
      %s29 = scalar_select %p26, %s28, %s19
      %p30 = scmp.ge.s32.totalorder %s29, 1
      %s31 = scalar_select %p30, 0, %s29
      %s32 = ssub.s32 %s20, %s27
      %s33 = ssub.s32 %s19, %s31
      %s34 = sor.u32 %s32, %s33
      %p35 = scmp.eq.s32.totalorder %s34, 0
      %s37 = sadd.s32 %s36, 1
      %s38 = scalar_select %p35, %s36, %s37
      %p41 = pneg %p35
      %p42 = scmp.eq.s32.totalorder %s12, 2
      %p43 = por %p41, %p42
      %p44 = scmp.ne.s32.totalorder %s36, %s39
      %p45 = scmp.eq.s32.totalorder %s12, 0
      %p46 = por %p44, %p45
      %p47 = scmp.ne.s32.totalorder %s36, %s39
      %p48 = scmp.eq.s32.totalorder %s17, 2
      %p49 = por %p47, %p48
      %p50 = scmp.ne.s32.totalorder %s39, %s40
      %p51 = scmp.eq.s32.totalorder %s17, 0
      %p52 = por %p50, %p51
      %p53 = scmp.ne.s32.totalorder %s39, %s40
      %p54 = scmp.eq.s32.totalorder %s18, 2
      %p55 = por %p53, %p54
      %p57 = scmp.ne.s32.totalorder %s40, %s56
      %p58 = scmp.eq.s32.totalorder %s18, 0
      %p59 = por %p57, %p58
      %s61 = sadd.s32 %s60, 1
      %p64 = scmp.eq.s32.totalorder %s12, 2
      %p65 = scmp.ne.s32.totalorder %s60, %s62
      %p66 = scmp.eq.s32.totalorder %s12, 0
      %p67 = por %p65, %p66
      %p68 = scmp.ne.s32.totalorder %s60, %s62
      %p69 = scmp.eq.s32.totalorder %s17, 2
      %p70 = por %p68, %p69
      %p71 = scmp.ne.s32.totalorder %s62, %s63
      %p72 = scmp.eq.s32.totalorder %s17, 0
      %p73 = por %p71, %p72
      %p74 = scmp.ne.s32.totalorder %s62, %s63
      %p75 = scmp.eq.s32.totalorder %s18, 2
      %p76 = por %p74, %p75
      %p78 = scmp.ne.s32.totalorder %s63, %s77
      %p79 = scmp.eq.s32.totalorder %s18, 0
      %p80 = por %p78, %p79
      %s82 = sadd.s32 %s81, 1
      %p85 = scmp.eq.s32.totalorder %s12, 2
      %p86 = scmp.ne.s32.totalorder %s81, %s83
      %p87 = scmp.eq.s32.totalorder %s12, 0
      %p88 = por %p86, %p87
      %p89 = scmp.ne.s32.totalorder %s81, %s83
      %p90 = scmp.eq.s32.totalorder %s17, 2
      %p91 = por %p89, %p90
      %p92 = scmp.ne.s32.totalorder %s83, %s84
      %p93 = scmp.eq.s32.totalorder %s17, 0
      %p94 = por %p92, %p93
      %p95 = scmp.ne.s32.totalorder %s83, %s84
      %p96 = scmp.eq.s32.totalorder %s18, 2
      %p97 = por %p95, %p96
      %p99 = scmp.ne.s32.totalorder %s84, %s98
      %p100 = scmp.eq.s32.totalorder %s18, 0
      %p101 = por %p99, %p100
      %s103 = sadd.s32 %s102, 1
      %p106 = scmp.eq.s32.totalorder %s12, 2
      %p107 = scmp.ne.s32.totalorder %s102, %s104
      %p108 = scmp.eq.s32.totalorder %s12, 0
      %p109 = por %p107, %p108
      %p110 = scmp.ne.s32.totalorder %s102, %s104
      %p111 = scmp.eq.s32.totalorder %s17, 2
      %p112 = por %p110, %p111
      %p113 = scmp.ne.s32.totalorder %s104, %s105
      %p114 = scmp.eq.s32.totalorder %s17, 0
      %p115 = por %p113, %p114
      %p116 = scmp.ne.s32.totalorder %s104, %s105
      %p117 = scmp.eq.s32.totalorder %s18, 2
      %p118 = por %p116, %p117
      %p120 = scmp.ne.s32.totalorder %s105, %s119
      %p121 = scmp.eq.s32.totalorder %s18, 0
      %p122 = por %p120, %p121
      %s123 = ssub.s32 %s19, %s31
      %p124 = scmp.eq.s32.totalorder %s123, 0
      %s126 = sadd.s32 %s125, 1
      %s127 = scalar_select %p124, %s125, %s126
      %p130 = pneg %p124
      %p131 = scmp.eq.s32.totalorder %s12, 2
      %p132 = por %p130, %p131
      %p133 = scmp.ne.s32.totalorder %s125, %s128
      %p134 = scmp.eq.s32.totalorder %s12, 0
      %p135 = por %p133, %p134
      %p136 = scmp.ne.s32.totalorder %s125, %s128
      %p137 = scmp.eq.s32.totalorder %s17, 2
      %p138 = por %p136, %p137
      %p139 = scmp.ne.s32.totalorder %s128, %s129
      %p140 = scmp.eq.s32.totalorder %s17, 0
      %p141 = por %p139, %p140
      %p142 = scmp.ne.s32.totalorder %s128, %s129
      %p143 = scmp.eq.s32.totalorder %s18, 2
      %p144 = por %p142, %p143
      %p146 = scmp.ne.s32.totalorder %s129, %s145
      %p147 = scmp.eq.s32.totalorder %s18, 0
      %p148 = por %p146, %p147
      %p149 = scmp.le.s32.totalorder 1, %s12
      %p150 = scmp.lt.s32.totalorder %s12, 4
      %p151 = pnand %p149, %p150
      %p152 = pneg %p151
      // Predicated region
      $region9: #{tpu_custom_call.1} parent=5 // pred_check
        _
      $region10: #{tpu_custom_call.1} parent=5 // pred_check_branch
        %154 = sbr.rel (%p151) target = $region12
      $region11: #{tpu_custom_call.1} parent=5 // pred_region
        %s155 = ssub.s32 %s12, 1
        // Predicated region
        $region13: #{tpu_custom_call.1} parent=11 // pred_check
          %p156 = pneg %p73
        $region14: #{tpu_custom_call.1} parent=11 // pred_check_branch
          %158 = sbr.rel (%p156) target = $region16
        $region15: #{tpu_custom_call.1} parent=11 // pred_region
          _
        $region16: #{tpu_custom_call.1} parent=11 // pred_fallthru
          _
        // Predicated region
        $region17: #{tpu_custom_call.1} parent=11 // pred_check
          %p159 = pneg %p94
        $region18: #{tpu_custom_call.1} parent=11 // pred_check_branch
          %161 = sbr.rel (%p159) target = $region20
        $region19: #{tpu_custom_call.1} parent=11 // pred_region
          %163 = vsyncadd [#allocation3], 0
          %s164 = sshll.u32 %s2, 4
          %s165 = int_to_ptr.hbm [resolvable:$true] %s164
          %s166 = sshll.u32 [#allocation2], 4
          %s167 = int_to_ptr.vmem [resolvable:$true] %s166
          %172 = dma.hbm_to_vmem [thread:$0]  %s165, 768, %s167, [#allocation3], 128, 128, 8
        $region20: #{tpu_custom_call.1} parent=11 // pred_fallthru
          _
        // Predicated region
        $region21: #{tpu_custom_call.1} parent=11 // pred_check
          %p173 = pneg %p115
        $region22: #{tpu_custom_call.1} parent=11 // pred_check_branch
          %175 = sbr.rel (%p173) target = $region24
        $region23: #{tpu_custom_call.1} parent=11 // pred_region
          _
        $region24: #{tpu_custom_call.1} parent=11 // pred_fallthru
          _
      $region12: #{tpu_custom_call.1} parent=5 // pred_fallthru
        _
      %p176 = scmp.lt.s32.totalorder %s12, 3
      // Predicated region
      $region25: #{tpu_custom_call.1} parent=5 // pred_check
        %p177 = pneg %p176
      $region26: #{tpu_custom_call.1} parent=5 // pred_check_branch
        %179 = sbr.rel (%p177) target = $region28
      $region27: #{tpu_custom_call.1} parent=5 // pred_region
        // Predicated region
        $region29: #{tpu_custom_call.1} parent=27 // pred_check
          %p180 = pneg %p46
        $region30: #{tpu_custom_call.1} parent=27 // pred_check_branch
          %182 = sbr.rel (%p180) target = $region32
        $region31: #{tpu_custom_call.1} parent=27 // pred_region
          %s183 = smul.u32 3, %s19
          %p184 = scmp.lt.s32.totalorder %s20, 2
          %s185 = scalar_select %p184, %s20, 2
          %p186 = scmp.lt.s32.totalorder %s183, 2
          %s187 = scalar_select %p186, %s183, 2
          %s188 = smul.addr %s185, 3
          %s189 = sadd.s32 %s187, %s188
          %s190 = smul.addr %s189, 4
          %s191 = scalar_lea.vmem %s0, %s190
          %s192 = smul.u32 3, %s19
        $region32: #{tpu_custom_call.1} parent=27 // pred_fallthru
          _
      $region28: #{tpu_custom_call.1} parent=5 // pred_fallthru
        _
      %p193 = scmp.le.s32.totalorder 1, %s12
      %p194 = scmp.lt.s32.totalorder %s12, 4
      %p195 = pnand %p193, %p194
      %p196 = pneg %p195
      // Predicated region
      $region33: #{tpu_custom_call.1} parent=5 // pred_check
        _
      $region34: #{tpu_custom_call.1} parent=5 // pred_check_branch
        %198 = sbr.rel (%p195) target = $region36
      $region35: #{tpu_custom_call.1} parent=5 // pred_region
        %s199 = ssub.s32 %s12, 1
        // Predicated region
        $region37: #{tpu_custom_call.1} parent=35 // pred_check
          %p200 = pneg %p94
        $region38: #{tpu_custom_call.1} parent=35 // pred_check_branch
          %202 = sbr.rel (%p200) target = $region40
        $region39: #{tpu_custom_call.1} parent=35 // pred_region
          %204 = dma.done [#allocation3], 768
        $region40: #{tpu_custom_call.1} parent=35 // pred_fallthru
          _
        %s205 = smul.u32 3, %s21
        %p206 = scmp.lt.s32.totalorder %s22, 2
        %s207 = scalar_select %p206, %s22, 2
        %p208 = scmp.lt.s32.totalorder %s205, 2
        %s209 = scalar_select %p208, %s205, 2
        %s210 = smul.addr %s207, 3
        %s211 = sadd.s32 %s209, %s210
        %s212 = smul.addr %s211, 4
        %s213 = scalar_lea.vmem %s0, %s212
        %p214 = pneg %p52
        %p215 = pneg %p49
        %p216 = pneg %p73
        %p217 = pneg %p70
        %p218 = pneg %p94
        %p219 = pneg %p91
        %p220 = pneg %p115
        %p221 = pneg %p112
        %p222 = pneg %p141
        %p223 = pneg %p138
        %s224 = smul.u32 3, %s21
        %p225 = scmp.lt.s32.totalorder %s22, 2
        %s226 = scalar_select %p225, %s22, 2
        %p227 = scmp.lt.s32.totalorder %s224, 2
        %s228 = scalar_select %p227, %s224, 2
        %s229 = smul.addr %s226, 3
        %s230 = sadd.s32 %s228, %s229
        %s231 = smul.addr %s230, 4
        %s232 = scalar_lea.vmem %s0, %s231
        %s233 = smul.u32 3, %s21
        %s234 = smul.u32 3, %s21
        %v235 = vld [vmem:[%s232] sm:$0xf]
        %v236 = vld [vmem:[%s232 + $0x4] sm:$0xf]
        %v237 = vld [vmem:[%s232 + $0x8] sm:$0x3]
        %v238 = vunpack.c.l.bf16 %v235
        %v239 = vunpack.c.l.bf16 %v236
        %v240 = vunpack.c.l.bf16 %v237
        %v241 = vld [vmem:[%s1] sm:$0xff]
        %v242 = vld [vmem:[%s1 + $0x8] sm:$0xff]
        %v243 = vld [vmem:[%s1 + $0x10] sm:$0xf]
        %vm244 = vcmask 162816
        %v246 = vsel %vm244, %v238, 0
        %v249 = vsel %vm244, %v239, 0
        %v252 = vsel %vm244, %v240, 0
        %vm254 = vcmask 1043456
        %v256 = vsel %vm254, %v243, 0
        %258 = vmatpush.msra.mxu0 0.0
        %259 = vmatpush.msra.mxu0 0.0
        %260 = vmatpush.msra.mxu0 0.0
        %261 = vmatpush.msra.mxu0 0.0
        %262 = vmatpush.msra.mxu0 0.0
        %263 = vmatpush.msra.mxu0 0.0
        %264 = vmatpush.msra.mxu0 0.0
        %265 = vmatpush.msra.mxu0 0.0
        %266 = vmatpush.msra.mxu0 0.0
        %267 = vmatpush.msra.mxu0 0.0
        %268 = vmatpush.msra.mxu0 0.0
        %269 = vmatpush.msra.mxu0 0.0
        %270 = vmatpush.msra.mxu0 0.0
        %271 = vmatpush.msra.mxu0 %v256
        %272 = vmatpush.msra.mxu0 %v242
        %273 = vmatpush.msra.mxu0 %v241
        %274 = vmatmul.f32.gmra.mxu0 %v246
        %v275 = vpop.f32.mrf.mxu0
        %v276 = vadd.f32 0.0, %v275
        %277 = vmatmul.f32.gmra.mxu0 %v249
        %v278 = vpop.f32.mrf.mxu0
        %v279 = vadd.f32 0.0, %v278
        %280 = vmatmul.f32.gmra.mxu0 %v252
        %v281 = vpop.f32.mrf.mxu0
        %v282 = vadd.f32 0.0, %v281
        %283 = vdwg.mxu0
        %s284 = smul.u32 %s22, 16
        %s285 = scalar_lea.vmem [#allocation2], %s284
        %v286 = vld [vmem:[%s285] sm:$0xff]
        %v287 = vld [vmem:[%s285 + $0x8] sm:$0xff]
        %vm288 = vcmask 130048
        %v290 = vsel %vm288, %v276, 0
        %v293 = vsel %vm288, %v279, 0
        %v296 = vsel %vm288, %v282, 0
        %298 = vmatpush.msra.mxu0 0.0
        %299 = vmatpush.msra.mxu0 0.0
        %300 = vmatpush.msra.mxu0 0.0
        %301 = vmatpush.msra.mxu0 0.0
        %302 = vmatpush.msra.mxu0 0.0
        %303 = vmatpush.msra.mxu0 0.0
        %304 = vmatpush.msra.mxu0 0.0
        %305 = vmatpush.msra.mxu0 0.0
        %306 = vmatpush.msra.mxu0 0.0
        %307 = vmatpush.msra.mxu0 0.0
        %308 = vmatpush.msra.mxu0 0.0
        %309 = vmatpush.msra.mxu0 0.0
        %310 = vmatpush.msra.mxu0 0.0
        %311 = vmatpush.msra.mxu0 0.0
        %312 = vmatpush.msra.mxu0 %v287
        %313 = vmatpush.msra.mxu0 %v286
        %314 = vmatmul.f32.gmra.mxu0 %v290
        %v315 = vpop.f32.mrf.mxu0
        %v316 = vadd.f32 0.0, %v315
        %317 = vmatmul.f32.gmra.mxu0 %v293
        %v318 = vpop.f32.mrf.mxu0
        %v319 = vadd.f32 0.0, %v318
        %320 = vmatmul.f32.gmra.mxu0 %v296
        %v321 = vpop.f32.mrf.mxu0
        %v322 = vadd.f32 0.0, %v321
        %323 = vdwg.mxu0
        %p324 = scmp.eq.s32.totalorder %s22, 0
        // Predicated region
        $region41: #{tpu_custom_call.1} parent=35 // pred_check
          %p325 = pneg %p324
        $region42: #{tpu_custom_call.1} parent=35 // pred_check_branch
          %327 = sbr.rel (%p325) target = $region44
        $region43: #{tpu_custom_call.1} parent=35 // pred_region
          %v328 = vld [vmem:[%s3] sm:$0x1]
          %v330 = vperm.slane %v328, 0
          %v332 = vadd.f32 %v330, %v316
          %v333 = vadd.f32 %v330, %v319
          %v334 = vadd.f32 %v330, %v322
          %vm335 = vcmask 261120
          %336 = vst.msk [vmem:[#allocation5] sm:$0xff] %vm335, %v332
          %337 = vst.msk [vmem:[#allocation5 + $0x8] sm:$0xff] %vm335, %v333
          %vm338 = vcmask 257024
          %339 = vst.msk [vmem:[#allocation5 + $0x10] sm:$0xf] %vm338, %v334
        $region44: #{tpu_custom_call.1} parent=35 // pred_fallthru
          _
        %p340 = scmp.gt.s32.totalorder %s22, 0
        // Predicated region
        $region45: #{tpu_custom_call.1} parent=35 // pred_check
          %p341 = pneg %p340
        $region46: #{tpu_custom_call.1} parent=35 // pred_check_branch
          %343 = sbr.rel (%p341) target = $region48
        $region47: #{tpu_custom_call.1} parent=35 // pred_region
          %v344 = vld [vmem:[#allocation5] sm:$0xff]
          %v345 = vld [vmem:[#allocation5 + $0x8] sm:$0xff]
          %v346 = vld [vmem:[#allocation5 + $0x10] sm:$0xf]
          %v347 = vadd.f32 %v344, %v316
          %v348 = vadd.f32 %v345, %v319
          %v349 = vadd.f32 %v346, %v322
          %vm350 = vcmask 261120
          %351 = vst.msk [vmem:[#allocation5] sm:$0xff] %vm350, %v347
          %352 = vst.msk [vmem:[#allocation5 + $0x8] sm:$0xff] %vm350, %v348
          %vm353 = vcmask 257024
          %354 = vst.msk [vmem:[#allocation5 + $0x10] sm:$0xf] %vm353, %v349
        $region48: #{tpu_custom_call.1} parent=35 // pred_fallthru
          _
        // Predicated region
        $region49: #{tpu_custom_call.1} parent=35 // pred_check
          %p355 = pneg %p138
        $region50: #{tpu_custom_call.1} parent=35 // pred_check_branch
          %357 = sbr.rel (%p355) target = $region52
        $region51: #{tpu_custom_call.1} parent=35 // pred_region
          %s358 = smul.u32 3, %s21
          %360 = vsyncadd [#allocation4], 0
          %s361 = smul.addr %s358, 8
          %s362 = scalar_lea.hbm %s4, %s361
          %s363 = sshll.u32 [#allocation5], 4
          %s364 = int_to_ptr.vmem [resolvable:$true] %s363
          %s365 = sshll.u32 %s362, 4
          %s366 = int_to_ptr.hbm [resolvable:$true] %s365
          %371 = dma.vmem_to_hbm [thread:$0]  %s364, 384, %s366, [#allocation4], 128, 128, 8
        $region52: #{tpu_custom_call.1} parent=35 // pred_fallthru
          _
        // Predicated region
        $region53: #{tpu_custom_call.1} parent=35 // pred_check
          %p372 = pneg %p138
        $region54: #{tpu_custom_call.1} parent=35 // pred_check_branch
          %374 = sbr.rel (%p372) target = $region56
        $region55: #{tpu_custom_call.1} parent=35 // pred_region
          %376 = dma.done [#allocation4], 384
        $region56: #{tpu_custom_call.1} parent=35 // pred_fallthru
          _
      $region36: #{tpu_custom_call.1} parent=5 // pred_fallthru
        _
      %p377 = scmp.le.s32.totalorder 2, %s12
      // Predicated region
      $region57: #{tpu_custom_call.1} parent=5 // pred_check
        %p378 = pneg %p377
      $region58: #{tpu_custom_call.1} parent=5 // pred_check_branch
        %380 = sbr.rel (%p378) target = $region60
      $region59: #{tpu_custom_call.1} parent=5 // pred_region
        %s381 = ssub.s32 %s12, 2
      $region60: #{tpu_custom_call.1} parent=5 // pred_fallthru
        _
    $region6: #{tpu_custom_call.1} parent=1 // loop_footer
      %s16 = sadd.s32 1, %s12
    $region7: #{tpu_custom_call.1} parent=1 // loop_footer_branch
      %11 = sbr.rel target = $region3
    $region8: #{tpu_custom_call.1} parent=1 // loop_exit
      _
    %382 = vsyncpa [#allocation3], 1
    %s383 = scalar_lea.sflag [#allocation3], 1
    %384 = vsyncpa %s383, 1
    %385 = vsyncpa [#allocation4], 1
    %s386 = scalar_lea.sflag [#allocation4], 1
    %387 = vsyncpa %s386, 1

</llo_original>
